<compile_context>
chip_gen: v5e
topology: v5e:2x2
jax: 0.10.0
libtpu: 0.0.40
codegen_flags: <defaults>
</compile_context>

<pallas_src>
import functools

import jax
import jax.numpy as jnp
from jax.experimental import pallas as pl
from jax.experimental.pallas import tpu as pltpu

FEATURES = 32   # `features` constant from the PyTorch module (latent width)
LANE = 128      # TPU lane width; every padded width is 128

# Weight-slab row indices (static Python ints -> zero-cost static slices).
(I_ENC1, I_MU, I_LV, I_DEC1, I_DEC2, I_EMB, I_FC1, I_FC2, I_SP) = range(9)
N_W = 9
N_BIAS_ROWS = 16  # 9 bias rows padded up to a multiple of 8 sublanes


def cfvae_kernel(x_ref, w_ref, b_ref, out_ref, *, mlp_inpemb, f_dim1):
    """Whole CFVAE forward on one batch tile. Every activation is [TB, 128].

    Lane layout (A = feat_dim), fixed entirely by host-side weight placement:
      input  x  : seq 0:A | zeros A:A+32 | eps A+32:A+64 | zeros
      output out: recon 0:A | mu A:A+32 | log_var A+32:A+64 | pred A+64:A+66
    """

    def mm(x, i):
        # x @ W[i] + b[i] on the MXU in bf16 with f32 accumulation.  Padded
        # rows/cols of W and padded bias lanes are zero, so padding lanes of
        # the result are exactly zero.
        return (jnp.dot(x.astype(jnp.bfloat16), w_ref[i],
                        preferred_element_type=jnp.float32)
                + b_ref[i:i + 1, :])

    def ln_noaffine(x, width, eps=1e-5):
        # LayerNorm over the first `width` lanes.  Pad lanes of x are exactly
        # zero, so plain full-lane sums give the correct moments (no mask ops).
        # gamma/beta were folded into the following linear on the host.
        mean = jnp.sum(x, axis=-1, keepdims=True) / width
        var = jnp.sum(x * x, axis=-1, keepdims=True) / width - mean * mean
        return (x - mean) * jax.lax.rsqrt(var + eps)

    x = x_ref[...]

    # --- VAE encoder: the two heads land directly at their packed lanes ---
    h = jnp.maximum(mm(x, I_ENC1), 0.0)     # eps lanes killed by zero W rows
    mu_s = mm(h, I_MU)                      # mu at lanes A:A+32, zeros elsewhere
    lv_s = mm(h, I_LV)                      # log_var at lanes A+32:A+64
    out_ref[...] = mu_s + lv_s              # early store (non-overlapping lanes)

    # --- reparameterization + decoder ---
    # v carries mu at lanes A:A+32 and eps*std at lanes A+32:A+64 (x is zero at
    # the mu lanes and holds eps at the log_var lanes; exp(0.5*0)=1 elsewhere).
    # w_dec1 is duplicated host-side at BOTH row ranges, so
    #   mm(v, I_DEC1) == (mu + eps*std) @ w_dec1 + b_dec1   exactly.
    v = mu_s + x * jnp.exp(0.5 * lv_s)
    d = jnp.maximum(mm(v, I_DEC1), 0.0)
    recon = mm(d, I_DEC2)                   # recon at lanes 0:A, zeros elsewhere
    out_ref[...] += recon

    # --- intervention-prediction MLP (LN affine folded into fc1/fc2 on host) ---
    e = ln_noaffine(mm(recon, I_EMB), mlp_inpemb)
    o1 = ln_noaffine(jnp.maximum(mm(e, I_FC1), 0.0), f_dim1)
    o2 = jnp.maximum(mm(o1, I_FC2), 0.0)
    out_ref[...] += mm(o2, I_SP)            # pred at lanes A+64:A+66


def prepare_packed_params(p):
    """Host-side fusion / splitting / lane placement / padding of raw params.

    All packing logic lives here, so the kernel is pure full-width elementwise
    ops + 9 K=N=128 matmuls and one full-lane output store.
    """
    feat_dim = p["w_enc1"].shape[0]
    emb_dim1 = p["w_enc1"].shape[1]
    mlp_inpemb = p["w_emb"].shape[1]
    f_dim1 = p["w_fc1"].shape[1]
    f_dim2 = p["w_fc2"].shape[1]
    A = feat_dim

    # TODO(synk): feat_dim > 62 would need a second 128-lane output section.
    assert A + 2 * FEATURES + 2 <= LANE, "packed layout needs feat_dim <= 62"
    for dim in (feat_dim, emb_dim1, mlp_inpemb, f_dim1, f_dim2):
        assert dim <= LANE, "layer width > 128 unsupported in this script"

    # Split the encoder head into mu / log_var.
    w_mu, w_lv = p["w_enc2"][:, :FEATURES], p["w_enc2"][:, FEATURES:]
    b_mu, b_lv = p["b_enc2"][:, :FEATURES], p["b_enc2"][:, FEATURES:]
    # Fold LayerNorm affine params into the following linear (exact algebra).
    w_fc1f = p["g_ln1"].reshape(-1, 1) * p["w_fc1"]
    b_fc1f = p["be_ln1"].reshape(1, -1) @ p["w_fc1"] + p["b_fc1"]
    w_fc2f = p["g_ln2"].reshape(-1, 1) * p["w_fc2"]
    b_fc2f = p["be_ln2"].reshape(1, -1) @ p["w_fc2"] + p["b_fc2"]
    # Fuse scorelayer + pred (the N=1 / K=1 bottleneck) into one [f_dim2, 2].
    w_sp = p["w_sc"] @ p["w_pred"]
    b_sp = p["b_sc"] @ p["w_pred"] + p["b_pred"]

    w = jnp.zeros((N_W, LANE, LANE), jnp.float32)
    b = jnp.zeros((N_BIAS_ROWS, LANE), jnp.float32)

    def put(w, b, idx, wt, bias, row_off=0, col_off=0):
        wt = jnp.asarray(wt, jnp.float32)
        bias = jnp.asarray(bias, jnp.float32).reshape(-1)
        w = w.at[idx, row_off:row_off + wt.shape[0],
                 col_off:col_off + wt.shape[1]].set(wt)
        b = b.at[idx, col_off:col_off + bias.shape[0]].set(bias)
        return w, b

    O_MU, O_LV, O_PRED = A, A + FEATURES, A + 2 * FEATURES

    w, b = put(w, b, I_ENC1, p["w_enc1"], p["b_enc1"])
    w, b = put(w, b, I_MU, w_mu, b_mu, col_off=O_MU)
    w, b = put(w, b, I_LV, w_lv, b_lv, col_off=O_LV)
    # Decoder layer 1: same weights at BOTH the mu-lane rows and the
    # eps*std-lane rows (see kernel comment); bias at its natural lanes.
    w, b = put(w, b, I_DEC1, p["w_dec1"], p["b_dec1"], row_off=O_MU)
    w = w.at[I_DEC1, O_LV:O_LV + FEATURES, :emb_dim1].set(
        jnp.asarray(p["w_dec1"], jnp.float32))
    w, b = put(w, b, I_DEC2, p["w_dec2"], p["b_dec2"])
    w, b = put(w, b, I_EMB, p["w_emb"], p["b_emb"])
    w, b = put(w, b, I_FC1, w_fc1f, b_fc1f)
    w, b = put(w, b, I_FC2, w_fc2f, b_fc2f)
    w, b = put(w, b, I_SP, w_sp, b_sp, col_off=O_PRED)

    # bf16 weights feed the MXU natively; biases stay f32 (added to f32 accum).
    return w.astype(jnp.bfloat16), b


def _round_up(x, m):
    return ((x + m - 1) // m) * m


def _cdiv(a, b):
    return -(-a // b)


def cfvae_forward(seq, eps, w_slab, b_slab, *, feat_dim, mlp_inpemb, f_dim1,
                  batch_tile=512):
    """Runs the packed CFVAE kernel; returns (recon, mu, log_var, pred_s1)."""
    batch = seq.shape[0]
    assert seq.shape[1] == feat_dim and eps.shape == (batch, FEATURES)
    A = feat_dim

    # Batch tiling: large tiles amortize per-grid-step overhead; keep the tile
    # count even whenever it is > 1 so the "parallel" batch axis keeps both of
    # v7x's TensorCores busy (v5e/v6e have a single TC and are unaffected).
    b_pad = _round_up(batch, 8)
    n_tiles = max(1, _cdiv(b_pad, batch_tile))
    if n_tiles > 1 and n_tiles % 2:
        n_tiles += 1
    tb = _round_up(_cdiv(b_pad, n_tiles), 8)
    b_pad = tb * n_tiles

    # Single packed input slab: seq | zeros | eps | zeros.
    x = jnp.zeros((b_pad, LANE), jnp.float32)
    x = x.at[:batch, :A].set(seq.astype(jnp.float32))
    x = x.at[:batch, A + FEATURES:A + 2 * FEATURES].set(eps.astype(jnp.float32))

    kernel = functools.partial(cfvae_kernel, mlp_inpemb=mlp_inpemb, f_dim1=f_dim1)

    flops = 2 * b_pad * N_W * LANE * LANE
    bytes_accessed = (x.size * 4 + w_slab.size * 2 + b_slab.size * 4
                      + b_pad * LANE * 4)

    out = pl.pallas_call(
        kernel,
        out_shape=jax.ShapeDtypeStruct((b_pad, LANE), jnp.float32),
        grid_spec=pltpu.PrefetchScalarGridSpec(
            num_scalar_prefetch=0,
            grid=(n_tiles,),
            in_specs=[
                pl.BlockSpec((tb, LANE), lambda i: (i, 0)),               # x slab
                pl.BlockSpec((N_W, LANE, LANE), lambda i: (0, 0, 0)),     # weights
                pl.BlockSpec((N_BIAS_ROWS, LANE), lambda i: (0, 0)),      # biases
            ],
            out_specs=pl.BlockSpec((tb, LANE), lambda i: (i, 0)),
        ),
        compiler_params=pltpu.CompilerParams(
            dimension_semantics=("parallel",),
            vmem_limit_bytes=32 * 1024 * 1024,
        ),
        cost_estimate=pl.CostEstimate(
            flops=flops,
            transcendentals=b_pad * (LANE + 2),
            bytes_accessed=bytes_accessed,
        ),
    )(x, w_slab, b_slab)

    recon = out[:batch, 0:A]
    mu = out[:batch, A:A + FEATURES]
    log_var = out[:batch, A + FEATURES:A + 2 * FEATURES]
    pred_s1 = out[:batch, A + 2 * FEATURES:A + 2 * FEATURES + 2]
    return recon, mu, log_var, pred_s1


def make_cfvae_forward(params, *, batch_tile=512):
    """Packs/fuses the weights ONCE and returns a jitted forward(seq, eps)."""
    feat_dim = params["w_enc1"].shape[0]
    mlp_inpemb = params["w_emb"].shape[1]
    f_dim1 = params["w_fc1"].shape[1]
    w_slab, b_slab = prepare_packed_params(params)

    @jax.jit
    def fwd(seq, eps):
        return cfvae_forward(seq, eps, w_slab, b_slab, feat_dim=feat_dim,
                             mlp_inpemb=mlp_inpemb, f_dim1=f_dim1,
                             batch_tile=batch_tile)

    return fwd


def init_params(key, feat_dim, emb_dim1, mlp_inpemb, f_dim1, f_dim2):
    """Deterministic synthetic parameters. Linear weights stored as [in, out]."""
    keys = jax.random.split(key, 9)

    def lin(k, fan_in, fan_out):
        w = jax.random.normal(k, (fan_in, fan_out), jnp.float32) * (1.0 / jnp.sqrt(fan_in))
        b = jnp.full((1, fan_out), 0.01, jnp.float32)
        return w, b

    p = {}
    p["w_enc1"], p["b_enc1"] = lin(keys[0], feat_dim, emb_dim1)
    p["w_enc2"], p["b_enc2"] = lin(keys[1], emb_dim1, 2 * FEATURES)
    p["w_dec1"], p["b_dec1"] = lin(keys[2], FEATURES, emb_dim1)
    p["w_dec2"], p["b_dec2"] = lin(keys[3], emb_dim1, feat_dim)
    p["w_emb"], p["b_emb"] = lin(keys[4], feat_dim, mlp_inpemb)
    p["g_ln1"] = jnp.ones((1, mlp_inpemb), jnp.float32)
    p["be_ln1"] = jnp.zeros((1, mlp_inpemb), jnp.float32)
    p["w_fc1"], p["b_fc1"] = lin(keys[5], mlp_inpemb, f_dim1)
    p["g_ln2"] = jnp.ones((1, f_dim1), jnp.float32)
    p["be_ln2"] = jnp.zeros((1, f_dim1), jnp.float32)
    p["w_fc2"], p["b_fc2"] = lin(keys[6], f_dim1, f_dim2)
    p["w_sc"], p["b_sc"] = lin(keys[7], f_dim2, 1)
    p["w_pred"], p["b_pred"] = lin(keys[8], 1, 2)
    return p


def reference_forward(seq, eps, p, matmul_dtype=jnp.float32):
    """Pure-JAX mirror of the PyTorch forward (unfused, unsplit, unpadded)."""
    def dot(a, w):
        return jnp.dot(a.astype(matmul_dtype), w.astype(matmul_dtype),
                       preferred_element_type=jnp.float32)

    def ln(x, g, b):
        m = jnp.mean(x, -1, keepdims=True)
        v = jnp.mean((x - m) ** 2, -1, keepdims=True)
        return (x - m) / jnp.sqrt(v + 1e-5) * g + b

    h = jax.nn.relu(dot(seq, p["w_enc1"]) + p["b_enc1"])
    enc = dot(h, p["w_enc2"]) + p["b_enc2"]
    mu, log_var = enc[:, :FEATURES], enc[:, FEATURES:]
    z = mu + eps * jnp.exp(0.5 * log_var)
    d = jax.nn.relu(dot(z, p["w_dec1"]) + p["b_dec1"])
    recon = dot(d, p["w_dec2"]) + p["b_dec2"]
    e = ln(dot(recon, p["w_emb"]) + p["b_emb"], p["g_ln1"], p["be_ln1"])
    o1 = ln(jax.nn.relu(dot(e, p["w_fc1"]) + p["b_fc1"]), p["g_ln2"], p["be_ln2"])
    o2 = jax.nn.relu(dot(o1, p["w_fc2"]) + p["b_fc2"])
    o3 = dot(o2, p["w_sc"]) + p["b_sc"]
    return recon, mu, log_var, dot(o3, p["w_pred"]) + p["b_pred"]


if __name__ == "__main__":
    batch = 8
    feat_dim = 16
    emb_dim1 = 32
    mlp_inpemb = 32
    f_dim1 = 32
    f_dim2 = 16

    root = jax.random.PRNGKey(0)
    k_params, k_seq, k_eps = jax.random.split(root, 3)

    params = init_params(k_params, feat_dim, emb_dim1, mlp_inpemb, f_dim1, f_dim2)
    seq = jax.random.normal(k_seq, (batch, feat_dim), jnp.float32)
    # torch.randn_like(std) replaced by a host-generated standard-normal sample
    eps = jax.random.normal(k_eps, (batch, FEATURES), jnp.float32)

    fwd = make_cfvae_forward(params)
    outs = jax.block_until_ready(fwd(seq, eps))

    # Tight check against a reference that uses the same bf16-operand matmul
    # numerics, plus a loose sanity check against the full-f32 PyTorch mirror.
    refs_bf16 = reference_forward(seq, eps, params, matmul_dtype=jnp.bfloat16)
    refs_f32 = reference_forward(seq, eps, params, matmul_dtype=jnp.float32)

    names = ("recon", "mu", "log_var", "pred_s1")
    for name, o, r16, r32 in zip(names, outs, refs_bf16, refs_f32):
        assert o.shape == r32.shape and o.dtype == r32.dtype, name
        assert bool(jnp.allclose(o, r16, atol=3e-2, rtol=3e-2)), (
            f"{name} mismatch vs bf16-matched reference")
        assert bool(jnp.allclose(o, r32, atol=1e-1, rtol=1e-1)), (
            f"{name} mismatch vs f32 reference")

    print("KERNEL_OK")
</pallas_src>

<mosaic_0001>
module attributes {stable_mosaic.version = 11 : i64} {
  func.func @cfvae_kernel(%arg0: i32, %arg1: memref<8x128xf32, #tpu.memory_space<vmem>>, %arg2: memref<9x128x128xbf16, #tpu.memory_space<vmem>>, %arg3: memref<16x128xf32, #tpu.memory_space<vmem>>, %arg4: memref<8x128xf32, #tpu.memory_space<vmem>>) attributes {dimension_semantics = [#tpu.dimension_semantics<parallel>], iteration_bounds = array<i64: 1>, scalar_prefetch = 0 : i64, scratch_operands = 0 : i64, tpu.core_type = #tpu.core_type<tc>, window_params = [{transform_indices = @transform_0, window_bounds = array<i64: 8, 128>}, {pipeline_mode = #tpu.pipeline_mode<synchronous>, transform_indices = @transform_1, window_bounds = array<i64: 9, 128, 128>}, {pipeline_mode = #tpu.pipeline_mode<synchronous>, transform_indices = @transform_2, window_bounds = array<i64: 16, 128>}, {transform_indices = @transform_3, window_bounds = array<i64: 8, 128>}]} {
    %c0 = arith.constant 0 : index
    %c0_0 = arith.constant 0 : index
    %0 = vector.load %arg1[%c0, %c0_0] : memref<8x128xf32, #tpu.memory_space<vmem>>, vector<8x128xf32>
    %1 = arith.truncf %0 : vector<8x128xf32> to vector<8x128xbf16>
    %c0_1 = arith.constant 0 : index
    %c0_2 = arith.constant 0 : index
    %c0_3 = arith.constant 0 : index
    %2 = vector.load %arg2[%c0_1, %c0_2, %c0_3] : memref<9x128x128xbf16, #tpu.memory_space<vmem>>, vector<1x128x128xbf16>
    %3 = vector.shape_cast %2 : vector<1x128x128xbf16> to vector<128x128xbf16>
    %cst = arith.constant dense<0.000000e+00> : vector<8x128xf32>
    %4 = tpu.matmul %1, %3, %cst {dimension_numbers = #tpu.dot_dimension_numbers<[1], [0], [0], [1], [0, 0, 1, 1], [], []>} : vector<8x128xbf16>, vector<128x128xbf16>, vector<8x128xf32> -> vector<8x128xf32>
    %c0_4 = arith.constant 0 : index
    %c0_5 = arith.constant 0 : index
    %5 = vector.load %arg3[%c0_4, %c0_5] : memref<16x128xf32, #tpu.memory_space<vmem>>, vector<1x128xf32>
    %6 = vector.broadcast %5 : vector<1x128xf32> to vector<8x128xf32>
    %7 = arith.addf %4, %6 : vector<8x128xf32>
    %cst_6 = arith.constant 0.000000e+00 : f32
    %8 = vector.broadcast %cst_6 : f32 to vector<8x128xf32>
    %9 = arith.maximumf %7, %8 : vector<8x128xf32>
    %10 = arith.truncf %9 : vector<8x128xf32> to vector<8x128xbf16>
    %c1 = arith.constant 1 : index
    %c0_7 = arith.constant 0 : index
    %c0_8 = arith.constant 0 : index
    %11 = vector.load %arg2[%c1, %c0_7, %c0_8] : memref<9x128x128xbf16, #tpu.memory_space<vmem>>, vector<1x128x128xbf16>
    %12 = vector.shape_cast %11 : vector<1x128x128xbf16> to vector<128x128xbf16>
    %cst_9 = arith.constant dense<0.000000e+00> : vector<8x128xf32>
    %13 = tpu.matmul %10, %12, %cst_9 {dimension_numbers = #tpu.dot_dimension_numbers<[1], [0], [0], [1], [0, 0, 1, 1], [], []>} : vector<8x128xbf16>, vector<128x128xbf16>, vector<8x128xf32> -> vector<8x128xf32>
    %c1_10 = arith.constant 1 : index
    %c0_11 = arith.constant 0 : index
    %14 = vector.load %arg3[%c1_10, %c0_11] : memref<16x128xf32, #tpu.memory_space<vmem>>, vector<1x128xf32>
    %15 = vector.broadcast %14 : vector<1x128xf32> to vector<8x128xf32>
    %16 = arith.addf %13, %15 : vector<8x128xf32>
    %17 = arith.truncf %9 : vector<8x128xf32> to vector<8x128xbf16>
    %c2 = arith.constant 2 : index
    %c0_12 = arith.constant 0 : index
    %c0_13 = arith.constant 0 : index
    %18 = vector.load %arg2[%c2, %c0_12, %c0_13] : memref<9x128x128xbf16, #tpu.memory_space<vmem>>, vector<1x128x128xbf16>
    %19 = vector.shape_cast %18 : vector<1x128x128xbf16> to vector<128x128xbf16>
    %cst_14 = arith.constant dense<0.000000e+00> : vector<8x128xf32>
    %20 = tpu.matmul %17, %19, %cst_14 {dimension_numbers = #tpu.dot_dimension_numbers<[1], [0], [0], [1], [0, 0, 1, 1], [], []>} : vector<8x128xbf16>, vector<128x128xbf16>, vector<8x128xf32> -> vector<8x128xf32>
    %c2_15 = arith.constant 2 : index
    %c0_16 = arith.constant 0 : index
    %21 = vector.load %arg3[%c2_15, %c0_16] : memref<16x128xf32, #tpu.memory_space<vmem>>, vector<1x128xf32>
    %22 = vector.broadcast %21 : vector<1x128xf32> to vector<8x128xf32>
    %23 = arith.addf %20, %22 : vector<8x128xf32>
    %24 = arith.addf %16, %23 : vector<8x128xf32>
    %c0_17 = arith.constant 0 : index
    %c0_18 = arith.constant 0 : index
    %25 = vector.load %arg4[%c0_17, %c0_18] : memref<8x128xf32, #tpu.memory_space<vmem>>, vector<8x128xf32>
    tpu.vector_store %arg4[%c0_17, %c0_18], %24 {strides = array<i32>} : memref<8x128xf32, #tpu.memory_space<vmem>>, vector<8x128xf32>,
    %cst_19 = arith.constant 5.000000e-01 : f32
    %26 = vector.broadcast %cst_19 : f32 to vector<8x128xf32>
    %27 = arith.mulf %26, %23 : vector<8x128xf32>
    %28 = math.exp %27 : vector<8x128xf32>
    %29 = arith.mulf %0, %28 : vector<8x128xf32>
    %30 = arith.addf %16, %29 : vector<8x128xf32>
    %31 = arith.truncf %30 : vector<8x128xf32> to vector<8x128xbf16>
    %c3 = arith.constant 3 : index
    %c0_20 = arith.constant 0 : index
    %c0_21 = arith.constant 0 : index
    %32 = vector.load %arg2[%c3, %c0_20, %c0_21] : memref<9x128x128xbf16, #tpu.memory_space<vmem>>, vector<1x128x128xbf16>
    %33 = vector.shape_cast %32 : vector<1x128x128xbf16> to vector<128x128xbf16>
    %cst_22 = arith.constant dense<0.000000e+00> : vector<8x128xf32>
    %34 = tpu.matmul %31, %33, %cst_22 {dimension_numbers = #tpu.dot_dimension_numbers<[1], [0], [0], [1], [0, 0, 1, 1], [], []>} : vector<8x128xbf16>, vector<128x128xbf16>, vector<8x128xf32> -> vector<8x128xf32>
    %c3_23 = arith.constant 3 : index
    %c0_24 = arith.constant 0 : index
    %35 = vector.load %arg3[%c3_23, %c0_24] : memref<16x128xf32, #tpu.memory_space<vmem>>, vector<1x128xf32>
    %36 = vector.broadcast %35 : vector<1x128xf32> to vector<8x128xf32>
    %37 = arith.addf %34, %36 : vector<8x128xf32>
    %cst_25 = arith.constant 0.000000e+00 : f32
    %38 = vector.broadcast %cst_25 : f32 to vector<8x128xf32>
    %39 = arith.maximumf %37, %38 : vector<8x128xf32>
    %40 = arith.truncf %39 : vector<8x128xf32> to vector<8x128xbf16>
    %c4 = arith.constant 4 : index
    %c0_26 = arith.constant 0 : index
    %c0_27 = arith.constant 0 : index
    %41 = vector.load %arg2[%c4, %c0_26, %c0_27] : memref<9x128x128xbf16, #tpu.memory_space<vmem>>, vector<1x128x128xbf16>
    %42 = vector.shape_cast %41 : vector<1x128x128xbf16> to vector<128x128xbf16>
    %cst_28 = arith.constant dense<0.000000e+00> : vector<8x128xf32>
    %43 = tpu.matmul %40, %42, %cst_28 {dimension_numbers = #tpu.dot_dimension_numbers<[1], [0], [0], [1], [0, 0, 1, 1], [], []>} : vector<8x128xbf16>, vector<128x128xbf16>, vector<8x128xf32> -> vector<8x128xf32>
    %c4_29 = arith.constant 4 : index
    %c0_30 = arith.constant 0 : index
    %44 = vector.load %arg3[%c4_29, %c0_30] : memref<16x128xf32, #tpu.memory_space<vmem>>, vector<1x128xf32>
    %45 = vector.broadcast %44 : vector<1x128xf32> to vector<8x128xf32>
    %46 = arith.addf %43, %45 : vector<8x128xf32>
    %c0_31 = arith.constant 0 : index
    %c0_32 = arith.constant 0 : index
    %47 = vector.load %arg4[%c0_31, %c0_32] : memref<8x128xf32, #tpu.memory_space<vmem>>, vector<8x128xf32>
    %48 = arith.addf %47, %46 : vector<8x128xf32>
    %c0_33 = arith.constant 0 : index
    %c0_34 = arith.constant 0 : index
    %49 = vector.load %arg4[%c0_33, %c0_34] : memref<8x128xf32, #tpu.memory_space<vmem>>, vector<8x128xf32>
    tpu.vector_store %arg4[%c0_33, %c0_34], %48 {strides = array<i32>} : memref<8x128xf32, #tpu.memory_space<vmem>>, vector<8x128xf32>,
    %50 = arith.truncf %46 : vector<8x128xf32> to vector<8x128xbf16>
    %c5 = arith.constant 5 : index
    %c0_35 = arith.constant 0 : index
    %c0_36 = arith.constant 0 : index
    %51 = vector.load %arg2[%c5, %c0_35, %c0_36] : memref<9x128x128xbf16, #tpu.memory_space<vmem>>, vector<1x128x128xbf16>
    %52 = vector.shape_cast %51 : vector<1x128x128xbf16> to vector<128x128xbf16>
    %cst_37 = arith.constant dense<0.000000e+00> : vector<8x128xf32>
    %53 = tpu.matmul %50, %52, %cst_37 {dimension_numbers = #tpu.dot_dimension_numbers<[1], [0], [0], [1], [0, 0, 1, 1], [], []>} : vector<8x128xbf16>, vector<128x128xbf16>, vector<8x128xf32> -> vector<8x128xf32>
    %c5_38 = arith.constant 5 : index
    %c0_39 = arith.constant 0 : index
    %54 = vector.load %arg3[%c5_38, %c0_39] : memref<16x128xf32, #tpu.memory_space<vmem>>, vector<1x128xf32>
    %55 = vector.broadcast %54 : vector<1x128xf32> to vector<8x128xf32>
    %56 = arith.addf %53, %55 : vector<8x128xf32>
    %cst_40 = arith.constant dense<0.000000e+00> : vector<8xf32>
    %57 = vector.multi_reduction <add>, %56, %cst_40 [1] : vector<8x128xf32> to vector<8xf32>
    %58 = vector.shape_cast %57 : vector<8xf32> to vector<8x1xf32>
    %cst_41 = arith.constant 3.200000e+01 : f32
    %59 = vector.broadcast %cst_41 : f32 to vector<8x1xf32>
    %60 = arith.divf %58, %59 : vector<8x1xf32>
    %61 = arith.mulf %56, %56 : vector<8x128xf32>
    %cst_42 = arith.constant dense<0.000000e+00> : vector<8xf32>
    %62 = vector.multi_reduction <add>, %61, %cst_42 [1] : vector<8x128xf32> to vector<8xf32>
    %63 = vector.shape_cast %62 : vector<8xf32> to vector<8x1xf32>
    %cst_43 = arith.constant 3.200000e+01 : f32
    %64 = vector.broadcast %cst_43 : f32 to vector<8x1xf32>
    %65 = arith.divf %63, %64 : vector<8x1xf32>
    %66 = arith.mulf %60, %60 : vector<8x1xf32>
    %67 = arith.subf %65, %66 : vector<8x1xf32>
    %68 = vector.broadcast %60 : vector<8x1xf32> to vector<8x128xf32>
    %69 = arith.subf %56, %68 : vector<8x128xf32>
    %cst_44 = arith.constant 9.99999974E-6 : f32
    %70 = vector.broadcast %cst_44 : f32 to vector<8x1xf32>
    %71 = arith.addf %67, %70 : vector<8x1xf32>
    %72 = math.rsqrt %71 : vector<8x1xf32>
    %73 = vector.broadcast %72 : vector<8x1xf32> to vector<8x128xf32>
    %74 = arith.mulf %69, %73 : vector<8x128xf32>
    %75 = arith.truncf %74 : vector<8x128xf32> to vector<8x128xbf16>
    %c6 = arith.constant 6 : index
    %c0_45 = arith.constant 0 : index
    %c0_46 = arith.constant 0 : index
    %76 = vector.load %arg2[%c6, %c0_45, %c0_46] : memref<9x128x128xbf16, #tpu.memory_space<vmem>>, vector<1x128x128xbf16>
    %77 = vector.shape_cast %76 : vector<1x128x128xbf16> to vector<128x128xbf16>
    %cst_47 = arith.constant dense<0.000000e+00> : vector<8x128xf32>
    %78 = tpu.matmul %75, %77, %cst_47 {dimension_numbers = #tpu.dot_dimension_numbers<[1], [0], [0], [1], [0, 0, 1, 1], [], []>} : vector<8x128xbf16>, vector<128x128xbf16>, vector<8x128xf32> -> vector<8x128xf32>
    %c6_48 = arith.constant 6 : index
    %c0_49 = arith.constant 0 : index
    %79 = vector.load %arg3[%c6_48, %c0_49] : memref<16x128xf32, #tpu.memory_space<vmem>>, vector<1x128xf32>
    %80 = vector.broadcast %79 : vector<1x128xf32> to vector<8x128xf32>
    %81 = arith.addf %78, %80 : vector<8x128xf32>
    %cst_50 = arith.constant 0.000000e+00 : f32
    %82 = vector.broadcast %cst_50 : f32 to vector<8x128xf32>
    %83 = arith.maximumf %81, %82 : vector<8x128xf32>
    %cst_51 = arith.constant dense<0.000000e+00> : vector<8xf32>
    %84 = vector.multi_reduction <add>, %83, %cst_51 [1] : vector<8x128xf32> to vector<8xf32>
    %85 = vector.shape_cast %84 : vector<8xf32> to vector<8x1xf32>
    %cst_52 = arith.constant 3.200000e+01 : f32
    %86 = vector.broadcast %cst_52 : f32 to vector<8x1xf32>
    %87 = arith.divf %85, %86 : vector<8x1xf32>
    %88 = arith.mulf %83, %83 : vector<8x128xf32>
    %cst_53 = arith.constant dense<0.000000e+00> : vector<8xf32>
    %89 = vector.multi_reduction <add>, %88, %cst_53 [1] : vector<8x128xf32> to vector<8xf32>
    %90 = vector.shape_cast %89 : vector<8xf32> to vector<8x1xf32>
    %cst_54 = arith.constant 3.200000e+01 : f32
    %91 = vector.broadcast %cst_54 : f32 to vector<8x1xf32>
    %92 = arith.divf %90, %91 : vector<8x1xf32>
    %93 = arith.mulf %87, %87 : vector<8x1xf32>
    %94 = arith.subf %92, %93 : vector<8x1xf32>
    %95 = vector.broadcast %87 : vector<8x1xf32> to vector<8x128xf32>
    %96 = arith.subf %83, %95 : vector<8x128xf32>
    %cst_55 = arith.constant 9.99999974E-6 : f32
    %97 = vector.broadcast %cst_55 : f32 to vector<8x1xf32>
    %98 = arith.addf %94, %97 : vector<8x1xf32>
    %99 = math.rsqrt %98 : vector<8x1xf32>
    %100 = vector.broadcast %99 : vector<8x1xf32> to vector<8x128xf32>
    %101 = arith.mulf %96, %100 : vector<8x128xf32>
    %102 = arith.truncf %101 : vector<8x128xf32> to vector<8x128xbf16>
    %c7 = arith.constant 7 : index
    %c0_56 = arith.constant 0 : index
    %c0_57 = arith.constant 0 : index
    %103 = vector.load %arg2[%c7, %c0_56, %c0_57] : memref<9x128x128xbf16, #tpu.memory_space<vmem>>, vector<1x128x128xbf16>
    %104 = vector.shape_cast %103 : vector<1x128x128xbf16> to vector<128x128xbf16>
    %cst_58 = arith.constant dense<0.000000e+00> : vector<8x128xf32>
    %105 = tpu.matmul %102, %104, %cst_58 {dimension_numbers = #tpu.dot_dimension_numbers<[1], [0], [0], [1], [0, 0, 1, 1], [], []>} : vector<8x128xbf16>, vector<128x128xbf16>, vector<8x128xf32> -> vector<8x128xf32>
    %c7_59 = arith.constant 7 : index
    %c0_60 = arith.constant 0 : index
    %106 = vector.load %arg3[%c7_59, %c0_60] : memref<16x128xf32, #tpu.memory_space<vmem>>, vector<1x128xf32>
    %107 = vector.broadcast %106 : vector<1x128xf32> to vector<8x128xf32>
    %108 = arith.addf %105, %107 : vector<8x128xf32>
    %cst_61 = arith.constant 0.000000e+00 : f32
    %109 = vector.broadcast %cst_61 : f32 to vector<8x128xf32>
    %110 = arith.maximumf %108, %109 : vector<8x128xf32>
    %c0_62 = arith.constant 0 : index
    %c0_63 = arith.constant 0 : index
    %111 = vector.load %arg4[%c0_62, %c0_63] : memref<8x128xf32, #tpu.memory_space<vmem>>, vector<8x128xf32>
    %112 = arith.truncf %110 : vector<8x128xf32> to vector<8x128xbf16>
    %c8 = arith.constant 8 : index
    %c0_64 = arith.constant 0 : index
    %c0_65 = arith.constant 0 : index
    %113 = vector.load %arg2[%c8, %c0_64, %c0_65] : memref<9x128x128xbf16, #tpu.memory_space<vmem>>, vector<1x128x128xbf16>
    %114 = vector.shape_cast %113 : vector<1x128x128xbf16> to vector<128x128xbf16>
    %cst_66 = arith.constant dense<0.000000e+00> : vector<8x128xf32>
    %115 = tpu.matmul %112, %114, %cst_66 {dimension_numbers = #tpu.dot_dimension_numbers<[1], [0], [0], [1], [0, 0, 1, 1], [], []>} : vector<8x128xbf16>, vector<128x128xbf16>, vector<8x128xf32> -> vector<8x128xf32>
    %c8_67 = arith.constant 8 : index
    %c0_68 = arith.constant 0 : index
    %116 = vector.load %arg3[%c8_67, %c0_68] : memref<16x128xf32, #tpu.memory_space<vmem>>, vector<1x128xf32>
    %117 = vector.broadcast %116 : vector<1x128xf32> to vector<8x128xf32>
    %118 = arith.addf %115, %117 : vector<8x128xf32>
    %119 = arith.addf %111, %118 : vector<8x128xf32>
    %c0_69 = arith.constant 0 : index
    %c0_70 = arith.constant 0 : index
    %120 = vector.load %arg4[%c0_69, %c0_70] : memref<8x128xf32, #tpu.memory_space<vmem>>, vector<8x128xf32>
    tpu.vector_store %arg4[%c0_69, %c0_70], %119 {strides = array<i32>} : memref<8x128xf32, #tpu.memory_space<vmem>>, vector<8x128xf32>,
    return
  }
  func.func @transform_0(%arg0: i32) -> (i32, i32) {
    %c0_i32 = arith.constant 0 : i32
    %c0_i32_0 = arith.constant 0 : i32
    return %arg0, %c0_i32 : i32, i32
  }
  func.func @transform_1(%arg0: i32) -> (i32, i32, i32) {
    %c0_i32 = arith.constant 0 : i32
    %c0_i32_0 = arith.constant 0 : i32
    %c0_i32_1 = arith.constant 0 : i32
    %c0_i32_2 = arith.constant 0 : i32
    return %c0_i32, %c0_i32_0, %c0_i32_1 : i32, i32, i32
  }
  func.func @transform_2(%arg0: i32) -> (i32, i32) {
    %c0_i32 = arith.constant 0 : i32
    %c0_i32_0 = arith.constant 0 : i32
    %c0_i32_1 = arith.constant 0 : i32
    return %c0_i32, %c0_i32_0 : i32, i32
  }
  func.func @transform_3(%arg0: i32) -> (i32, i32) {
    %c0_i32 = arith.constant 0 : i32
    %c0_i32_0 = arith.constant 0 : i32
    return %arg0, %c0_i32 : i32, i32
  }
}

</mosaic_0001>

<llo_original>
// kernel: fwd.1
$region0: #{fwd.1}
  #allocation0 [shape = 'u32[]', space=smem, size = 0x4, offset = 0x4, fixed_abs, tag = 'smem constant byte address 0x4 - core index']
  #allocation1 [shape = 'u32[72,128]{1,0:T(1,128)}', space=vmem, size = 0x9000, scoped, tag = 'internal scratch']
  %s0 = inlined_call_operand.vmem [shape: f32[8,128], index: 0, kind: input, shape index: {}]
  %s1 = inlined_call_operand.hbm [shape: bf16[9,128,128], index: 1, kind: input, shape index: {}]
  %s2 = inlined_call_operand.vmem [shape: f32[16,128], index: 2, kind: input, shape index: {}]
  %s3 = inlined_call_operand.vmem [shape: f32[8,128], index: 3, kind: output, shape index: {}]
  %s4 = sld [smem:[#allocation0]]
  $region26: #{fwd.1} parent=0
    _
  %s6 = ssub.s32 1, %s4
  %s7 = scalar_select 0, %s6, %s4
  $region1: #{fwd.1} parent=0
    #allocation2 [shape = 'u8[294912]{0}', space=vmem, size = 0x48000, scoped, tag = 'input window, operand 1, single buffered']
    #allocation3 [shape = 's32[1]{0}', space=sflag, size = 0x4, scoped, tag = 'scoped memory for fwd.1']
    %8 = vsyncpa [#allocation3], 0
    // Predicated region
    $region2: #{fwd.1} parent=1 // pred_check
      _
    $region3: #{fwd.1} parent=1 // pred_check_branch
      %10 = sbr.rel (0) target = $region5
    $region4: #{fwd.1} parent=1 // pred_region
      _
    $region5: #{fwd.1} parent=1 // pred_fallthru
      _
    // Predicated region
    $region6: #{fwd.1} parent=1 // pred_check
      _
    $region7: #{fwd.1} parent=1 // pred_check_branch
      %12 = sbr.rel (0) target = $region9
    $region8: #{fwd.1} parent=1 // pred_region
      %14 = vsyncadd [#allocation3], 0
      %s15 = sshll.u32 %s1, 4
      %s16 = int_to_ptr.hbm [resolvable:$true] %s15
      %s17 = sshll.u32 [#allocation2], 4
      %s18 = int_to_ptr.vmem [resolvable:$true] %s17
      %23 = dma.hbm_to_vmem [thread:$0]  %s16, 9216, %s18, [#allocation3], 64, 64, 4
    $region9: #{fwd.1} parent=1 // pred_fallthru
      _
    // Predicated region
    $region10: #{fwd.1} parent=1 // pred_check
      _
    $region11: #{fwd.1} parent=1 // pred_check_branch
      %25 = sbr.rel (0) target = $region13
    $region12: #{fwd.1} parent=1 // pred_region
      _
    $region13: #{fwd.1} parent=1 // pred_fallthru
      _
    // Predicated region
    $region14: #{fwd.1} parent=1 // pred_check
      _
    $region15: #{fwd.1} parent=1 // pred_check_branch
      %27 = sbr.rel (0) target = $region17
    $region16: #{fwd.1} parent=1 // pred_region
      %29 = dma.done [#allocation3], 9216
    $region17: #{fwd.1} parent=1 // pred_fallthru
      _
    %v30 = vld [vmem:[%s0] sm:$0xff]
    %v31 = vpack.c.bf16 %v30, %v30
    %v32 = vld [vmem:[#allocation2] sm:$0xf]
    %v33 = vld [vmem:[#allocation2 + $0x4] sm:$0xf]
    %v34 = vld [vmem:[#allocation2 + $0x8] sm:$0xf]
    %v35 = vld [vmem:[#allocation2 + $0xc] sm:$0xf]
    %v36 = vld [vmem:[#allocation2 + $0x10] sm:$0xf]
    %v37 = vld [vmem:[#allocation2 + $0x14] sm:$0xf]
    %v38 = vld [vmem:[#allocation2 + $0x18] sm:$0xf]
    %v39 = vld [vmem:[#allocation2 + $0x1c] sm:$0xf]
    %v40 = vld [vmem:[#allocation2 + $0x20] sm:$0xf]
    %v41 = vld [vmem:[#allocation2 + $0x24] sm:$0xf]
    %v42 = vld [vmem:[#allocation2 + $0x28] sm:$0xf]
    %v43 = vld [vmem:[#allocation2 + $0x2c] sm:$0xf]
    %v44 = vld [vmem:[#allocation2 + $0x30] sm:$0xf]
    %v45 = vld [vmem:[#allocation2 + $0x34] sm:$0xf]
    %v46 = vld [vmem:[#allocation2 + $0x38] sm:$0xf]
    %v47 = vld [vmem:[#allocation2 + $0x3c] sm:$0xf]
    %v48 = vld [vmem:[%s2] sm:$0x1]
    %v49 = vperm.slane %v48, 0
    %v66 = vunpack.c.l.b16 %v32
    %v67 = vunpack.c.l.b16 %v33
    %v68 = vunpack.c.l.b16 %v34
    %v69 = vunpack.c.l.b16 %v35
    %v70 = vunpack.c.l.b16 %v36
    %v71 = vunpack.c.l.b16 %v37
    %v72 = vunpack.c.l.b16 %v38
    %v73 = vunpack.c.l.b16 %v39
    %v74 = vunpack.c.l.b16 %v40
    %v75 = vunpack.c.l.b16 %v41
    %v76 = vunpack.c.l.b16 %v42
    %v77 = vunpack.c.l.b16 %v43
    %v78 = vunpack.c.l.b16 %v44
    %v79 = vunpack.c.l.b16 %v45
    %v80 = vunpack.c.l.b16 %v46
    %v81 = vunpack.c.l.b16 %v47
    %v82 = vpack.c.b16 %v67, %v66
    %v83 = vpack.c.b16 %v69, %v68
    %v84 = vpack.c.b16 %v71, %v70
    %v85 = vpack.c.b16 %v73, %v72
    %v86 = vpack.c.b16 %v75, %v74
    %v87 = vpack.c.b16 %v77, %v76
    %v88 = vpack.c.b16 %v79, %v78
    %v89 = vpack.c.b16 %v81, %v80
    %98 = vmatpush.bf16.msra.mxu0 %v89
    %99 = vmatpush.bf16.msra.mxu0 %v88
    %100 = vmatpush.bf16.msra.mxu0 %v87
    %101 = vmatpush.bf16.msra.mxu0 %v86
    %102 = vmatpush.bf16.msra.mxu0 %v85
    %103 = vmatpush.bf16.msra.mxu0 %v84
    %104 = vmatpush.bf16.msra.mxu0 %v83
    %105 = vmatpush.bf16.msra.mxu0 %v82
    %106 = vmatmul.bf16.gmra.mxu0 %v31
    %v107 = vpop.f32.mrf.mxu0
    %v108 = vadd.f32 %v49, %v107
    %v109 = vpop.f32.mrf.mxu0
    %110 = vdwg.mxu0
    %v111 = vmax.f32 %v108, 0.0
    %v112 = vpack.c.bf16 %v111, %v111
    %s113 = scalar_lea.vmem [#allocation2], 64
    %v114 = vld [vmem:[%s113] sm:$0xf]
    %v115 = vld [vmem:[%s113 + $0x4] sm:$0xf]
    %v116 = vld [vmem:[%s113 + $0x8] sm:$0xf]
    %v117 = vld [vmem:[%s113 + $0xc] sm:$0xf]
    %v118 = vld [vmem:[%s113 + $0x10] sm:$0xf]
    %v119 = vld [vmem:[%s113 + $0x14] sm:$0xf]
    %v120 = vld [vmem:[%s113 + $0x18] sm:$0xf]
    %v121 = vld [vmem:[%s113 + $0x1c] sm:$0xf]
    %v122 = vld [vmem:[%s113 + $0x20] sm:$0xf]
    %v123 = vld [vmem:[%s113 + $0x24] sm:$0xf]
    %v124 = vld [vmem:[%s113 + $0x28] sm:$0xf]
    %v125 = vld [vmem:[%s113 + $0x2c] sm:$0xf]
    %v126 = vld [vmem:[%s113 + $0x30] sm:$0xf]
    %v127 = vld [vmem:[%s113 + $0x34] sm:$0xf]
    %v128 = vld [vmem:[%s113 + $0x38] sm:$0xf]
    %v129 = vld [vmem:[%s113 + $0x3c] sm:$0xf]
    %v130 = vld [vmem:[%s2 + $0x1] sm:$0x1]
    %v131 = vperm.slane %v130, 0
    %v148 = vunpack.c.l.b16 %v114
    %v149 = vunpack.c.l.b16 %v115
    %v150 = vunpack.c.l.b16 %v116
    %v151 = vunpack.c.l.b16 %v117
    %v152 = vunpack.c.l.b16 %v118
    %v153 = vunpack.c.l.b16 %v119
    %v154 = vunpack.c.l.b16 %v120
    %v155 = vunpack.c.l.b16 %v121
    %v156 = vunpack.c.l.b16 %v122
    %v157 = vunpack.c.l.b16 %v123
    %v158 = vunpack.c.l.b16 %v124
    %v159 = vunpack.c.l.b16 %v125
    %v160 = vunpack.c.l.b16 %v126
    %v161 = vunpack.c.l.b16 %v127
    %v162 = vunpack.c.l.b16 %v128
    %v163 = vunpack.c.l.b16 %v129
    %v164 = vpack.c.b16 %v149, %v148
    %v165 = vpack.c.b16 %v151, %v150
    %v166 = vpack.c.b16 %v153, %v152
    %v167 = vpack.c.b16 %v155, %v154
    %v168 = vpack.c.b16 %v157, %v156
    %v169 = vpack.c.b16 %v159, %v158
    %v170 = vpack.c.b16 %v161, %v160
    %v171 = vpack.c.b16 %v163, %v162
    %180 = vmatpush.bf16.msra.mxu0 %v171
    %181 = vmatpush.bf16.msra.mxu0 %v170
    %182 = vmatpush.bf16.msra.mxu0 %v169
    %183 = vmatpush.bf16.msra.mxu0 %v168
    %184 = vmatpush.bf16.msra.mxu0 %v167
    %185 = vmatpush.bf16.msra.mxu0 %v166
    %186 = vmatpush.bf16.msra.mxu0 %v165
    %187 = vmatpush.bf16.msra.mxu0 %v164
    %188 = vmatmul.bf16.gmra.mxu0 %v112
    %v189 = vpop.f32.mrf.mxu0
    %v190 = vadd.f32 %v131, %v189
    %v191 = vpop.f32.mrf.mxu0
    %192 = vdwg.mxu0
    %s193 = scalar_lea.vmem [#allocation2], 128
    %v194 = vld [vmem:[%s193] sm:$0xf]
    %v195 = vld [vmem:[%s193 + $0x4] sm:$0xf]
    %v196 = vld [vmem:[%s193 + $0x8] sm:$0xf]
    %v197 = vld [vmem:[%s193 + $0xc] sm:$0xf]
    %v198 = vld [vmem:[%s193 + $0x10] sm:$0xf]
    %v199 = vld [vmem:[%s193 + $0x14] sm:$0xf]
    %v200 = vld [vmem:[%s193 + $0x18] sm:$0xf]
    %v201 = vld [vmem:[%s193 + $0x1c] sm:$0xf]
    %v202 = vld [vmem:[%s193 + $0x20] sm:$0xf]
    %v203 = vld [vmem:[%s193 + $0x24] sm:$0xf]
    %v204 = vld [vmem:[%s193 + $0x28] sm:$0xf]
    %v205 = vld [vmem:[%s193 + $0x2c] sm:$0xf]
    %v206 = vld [vmem:[%s193 + $0x30] sm:$0xf]
    %v207 = vld [vmem:[%s193 + $0x34] sm:$0xf]
    %v208 = vld [vmem:[%s193 + $0x38] sm:$0xf]
    %v209 = vld [vmem:[%s193 + $0x3c] sm:$0xf]
    %v210 = vld [vmem:[%s2 + $0x2] sm:$0x1]
    %v211 = vperm.slane %v210, 0
    %v228 = vunpack.c.l.b16 %v194
    %v229 = vunpack.c.l.b16 %v195
    %v230 = vunpack.c.l.b16 %v196
    %v231 = vunpack.c.l.b16 %v197
    %v232 = vunpack.c.l.b16 %v198
    %v233 = vunpack.c.l.b16 %v199
    %v234 = vunpack.c.l.b16 %v200
    %v235 = vunpack.c.l.b16 %v201
    %v236 = vunpack.c.l.b16 %v202
    %v237 = vunpack.c.l.b16 %v203
    %v238 = vunpack.c.l.b16 %v204
    %v239 = vunpack.c.l.b16 %v205
    %v240 = vunpack.c.l.b16 %v206
    %v241 = vunpack.c.l.b16 %v207
    %v242 = vunpack.c.l.b16 %v208
    %v243 = vunpack.c.l.b16 %v209
    %v244 = vpack.c.b16 %v229, %v228
    %v245 = vpack.c.b16 %v231, %v230
    %v246 = vpack.c.b16 %v233, %v232
    %v247 = vpack.c.b16 %v235, %v234
    %v248 = vpack.c.b16 %v237, %v236
    %v249 = vpack.c.b16 %v239, %v238
    %v250 = vpack.c.b16 %v241, %v240
    %v251 = vpack.c.b16 %v243, %v242
    %260 = vmatpush.bf16.msra.mxu0 %v251
    %261 = vmatpush.bf16.msra.mxu0 %v250
    %262 = vmatpush.bf16.msra.mxu0 %v249
    %263 = vmatpush.bf16.msra.mxu0 %v248
    %264 = vmatpush.bf16.msra.mxu0 %v247
    %265 = vmatpush.bf16.msra.mxu0 %v246
    %266 = vmatpush.bf16.msra.mxu0 %v245
    %267 = vmatpush.bf16.msra.mxu0 %v244
    %268 = vmatmul.bf16.gmra.mxu0 %v112
    %v269 = vpop.f32.mrf.mxu0
    %v270 = vadd.f32 %v211, %v269
    %v271 = vpop.f32.mrf.mxu0
    %272 = vdwg.mxu0
    %v273 = vadd.f32 %v190, %v270
    %274 = vst [vmem:[%s3] sm:$0xff] %v273
    %v275 = vmul.f32 %v270, 0.5
    %v276 = vmul.f32 %v275, 1.442695
    %v277 = vpow.pop %v276
    %v278 = vmul.f32 %v30, %v277
    %v279 = vadd.f32 %v190, %v278
    %v280 = vpack.c.bf16 %v279, %v279
    %s281 = scalar_lea.vmem [#allocation2], 192
    %v282 = vld [vmem:[%s281] sm:$0xf]
    %v283 = vld [vmem:[%s281 + $0x4] sm:$0xf]
    %v284 = vld [vmem:[%s281 + $0x8] sm:$0xf]
    %v285 = vld [vmem:[%s281 + $0xc] sm:$0xf]
    %v286 = vld [vmem:[%s281 + $0x10] sm:$0xf]
    %v287 = vld [vmem:[%s281 + $0x14] sm:$0xf]
    %v288 = vld [vmem:[%s281 + $0x18] sm:$0xf]
    %v289 = vld [vmem:[%s281 + $0x1c] sm:$0xf]
    %v290 = vld [vmem:[%s281 + $0x20] sm:$0xf]
    %v291 = vld [vmem:[%s281 + $0x24] sm:$0xf]
    %v292 = vld [vmem:[%s281 + $0x28] sm:$0xf]
    %v293 = vld [vmem:[%s281 + $0x2c] sm:$0xf]
    %v294 = vld [vmem:[%s281 + $0x30] sm:$0xf]
    %v295 = vld [vmem:[%s281 + $0x34] sm:$0xf]
    %v296 = vld [vmem:[%s281 + $0x38] sm:$0xf]
    %v297 = vld [vmem:[%s281 + $0x3c] sm:$0xf]
    %v298 = vld [vmem:[%s2 + $0x3] sm:$0x1]
    %v299 = vperm.slane %v298, 0
    %v316 = vunpack.c.l.b16 %v282
    %v317 = vunpack.c.l.b16 %v283
    %v318 = vunpack.c.l.b16 %v284
    %v319 = vunpack.c.l.b16 %v285
    %v320 = vunpack.c.l.b16 %v286
    %v321 = vunpack.c.l.b16 %v287
    %v322 = vunpack.c.l.b16 %v288
    %v323 = vunpack.c.l.b16 %v289
    %v324 = vunpack.c.l.b16 %v290
    %v325 = vunpack.c.l.b16 %v291
    %v326 = vunpack.c.l.b16 %v292
    %v327 = vunpack.c.l.b16 %v293
    %v328 = vunpack.c.l.b16 %v294
    %v329 = vunpack.c.l.b16 %v295
    %v330 = vunpack.c.l.b16 %v296
    %v331 = vunpack.c.l.b16 %v297
    %v332 = vpack.c.b16 %v317, %v316
    %v333 = vpack.c.b16 %v319, %v318
    %v334 = vpack.c.b16 %v321, %v320
    %v335 = vpack.c.b16 %v323, %v322
    %v336 = vpack.c.b16 %v325, %v324
    %v337 = vpack.c.b16 %v327, %v326
    %v338 = vpack.c.b16 %v329, %v328
    %v339 = vpack.c.b16 %v331, %v330
    %348 = vmatpush.bf16.msra.mxu0 %v339
    %349 = vmatpush.bf16.msra.mxu0 %v338
    %350 = vmatpush.bf16.msra.mxu0 %v337
    %351 = vmatpush.bf16.msra.mxu0 %v336
    %352 = vmatpush.bf16.msra.mxu0 %v335
    %353 = vmatpush.bf16.msra.mxu0 %v334
    %354 = vmatpush.bf16.msra.mxu0 %v333
    %355 = vmatpush.bf16.msra.mxu0 %v332
    %356 = vmatmul.bf16.gmra.mxu0 %v280
    %v357 = vpop.f32.mrf.mxu0
    %v358 = vadd.f32 %v299, %v357
    %v359 = vpop.f32.mrf.mxu0
    %360 = vdwg.mxu0
    %v361 = vmax.f32 %v358, 0.0
    %v362 = vpack.c.bf16 %v361, %v361
    %s363 = scalar_lea.vmem [#allocation2], 256
    %v364 = vld [vmem:[%s363] sm:$0xf]
    %v365 = vld [vmem:[%s363 + $0x4] sm:$0xf]
    %v366 = vld [vmem:[%s363 + $0x8] sm:$0xf]
    %v367 = vld [vmem:[%s363 + $0xc] sm:$0xf]
    %v368 = vld [vmem:[%s363 + $0x10] sm:$0xf]
    %v369 = vld [vmem:[%s363 + $0x14] sm:$0xf]
    %v370 = vld [vmem:[%s363 + $0x18] sm:$0xf]
    %v371 = vld [vmem:[%s363 + $0x1c] sm:$0xf]
    %v372 = vld [vmem:[%s363 + $0x20] sm:$0xf]
    %v373 = vld [vmem:[%s363 + $0x24] sm:$0xf]
    %v374 = vld [vmem:[%s363 + $0x28] sm:$0xf]
    %v375 = vld [vmem:[%s363 + $0x2c] sm:$0xf]
    %v376 = vld [vmem:[%s363 + $0x30] sm:$0xf]
    %v377 = vld [vmem:[%s363 + $0x34] sm:$0xf]
    %v378 = vld [vmem:[%s363 + $0x38] sm:$0xf]
    %v379 = vld [vmem:[%s363 + $0x3c] sm:$0xf]
    %v380 = vld [vmem:[%s2 + $0x4] sm:$0x1]
    %v381 = vperm.slane %v380, 0
    %v398 = vunpack.c.l.b16 %v364
    %v399 = vunpack.c.l.b16 %v365
    %v400 = vunpack.c.l.b16 %v366
    %v401 = vunpack.c.l.b16 %v367
    %v402 = vunpack.c.l.b16 %v368
    %v403 = vunpack.c.l.b16 %v369
    %v404 = vunpack.c.l.b16 %v370
    %v405 = vunpack.c.l.b16 %v371
    %v406 = vunpack.c.l.b16 %v372
    %v407 = vunpack.c.l.b16 %v373
    %v408 = vunpack.c.l.b16 %v374
    %v409 = vunpack.c.l.b16 %v375
    %v410 = vunpack.c.l.b16 %v376
    %v411 = vunpack.c.l.b16 %v377
    %v412 = vunpack.c.l.b16 %v378
    %v413 = vunpack.c.l.b16 %v379
    %v414 = vpack.c.b16 %v399, %v398
    %v415 = vpack.c.b16 %v401, %v400
    %v416 = vpack.c.b16 %v403, %v402
    %v417 = vpack.c.b16 %v405, %v404
    %v418 = vpack.c.b16 %v407, %v406
    %v419 = vpack.c.b16 %v409, %v408
    %v420 = vpack.c.b16 %v411, %v410
    %v421 = vpack.c.b16 %v413, %v412
    %430 = vmatpush.bf16.msra.mxu0 %v421
    %431 = vmatpush.bf16.msra.mxu0 %v420
    %432 = vmatpush.bf16.msra.mxu0 %v419
    %433 = vmatpush.bf16.msra.mxu0 %v418
    %434 = vmatpush.bf16.msra.mxu0 %v417
    %435 = vmatpush.bf16.msra.mxu0 %v416
    %436 = vmatpush.bf16.msra.mxu0 %v415
    %437 = vmatpush.bf16.msra.mxu0 %v414
    %438 = vmatmul.bf16.gmra.mxu0 %v362
    %v439 = vpop.f32.mrf.mxu0
    %v440 = vadd.f32 %v381, %v439
    %v441 = vpop.f32.mrf.mxu0
    %442 = vdwg.mxu0
    %v443 = vld [vmem:[%s3] sm:$0xff]
    %v444 = vadd.f32 %v443, %v440
    %445 = vst [vmem:[%s3] sm:$0xff] %v444
    %v446 = vpack.c.bf16 %v440, %v440
    %s447 = scalar_lea.vmem [#allocation2], 320
    %v448 = vld [vmem:[%s447] sm:$0xf]
    %v449 = vld [vmem:[%s447 + $0x4] sm:$0xf]
    %v450 = vld [vmem:[%s447 + $0x8] sm:$0xf]
    %v451 = vld [vmem:[%s447 + $0xc] sm:$0xf]
    %v452 = vld [vmem:[%s447 + $0x10] sm:$0xf]
    %v453 = vld [vmem:[%s447 + $0x14] sm:$0xf]
    %v454 = vld [vmem:[%s447 + $0x18] sm:$0xf]
    %v455 = vld [vmem:[%s447 + $0x1c] sm:$0xf]
    %v456 = vld [vmem:[%s447 + $0x20] sm:$0xf]
    %v457 = vld [vmem:[%s447 + $0x24] sm:$0xf]
    %v458 = vld [vmem:[%s447 + $0x28] sm:$0xf]
    %v459 = vld [vmem:[%s447 + $0x2c] sm:$0xf]
    %v460 = vld [vmem:[%s447 + $0x30] sm:$0xf]
    %v461 = vld [vmem:[%s447 + $0x34] sm:$0xf]
    %v462 = vld [vmem:[%s447 + $0x38] sm:$0xf]
    %v463 = vld [vmem:[%s447 + $0x3c] sm:$0xf]
    %v464 = vld [vmem:[%s2 + $0x5] sm:$0x1]
    %v465 = vperm.slane %v464, 0
    %v482 = vunpack.c.l.b16 %v448
    %v483 = vunpack.c.l.b16 %v449
    %v484 = vunpack.c.l.b16 %v450
    %v485 = vunpack.c.l.b16 %v451
    %v486 = vunpack.c.l.b16 %v452
    %v487 = vunpack.c.l.b16 %v453
    %v488 = vunpack.c.l.b16 %v454
    %v489 = vunpack.c.l.b16 %v455
    %v490 = vunpack.c.l.b16 %v456
    %v491 = vunpack.c.l.b16 %v457
    %v492 = vunpack.c.l.b16 %v458
    %v493 = vunpack.c.l.b16 %v459
    %v494 = vunpack.c.l.b16 %v460
    %v495 = vunpack.c.l.b16 %v461
    %v496 = vunpack.c.l.b16 %v462
    %v497 = vunpack.c.l.b16 %v463
    %v498 = vpack.c.b16 %v483, %v482
    %v499 = vpack.c.b16 %v485, %v484
    %v500 = vpack.c.b16 %v487, %v486
    %v501 = vpack.c.b16 %v489, %v488
    %v502 = vpack.c.b16 %v491, %v490
    %v503 = vpack.c.b16 %v493, %v492
    %v504 = vpack.c.b16 %v495, %v494
    %v505 = vpack.c.b16 %v497, %v496
    %514 = vmatpush.bf16.msra.mxu0 %v505
    %515 = vmatpush.bf16.msra.mxu0 %v504
    %516 = vmatpush.bf16.msra.mxu0 %v503
    %517 = vmatpush.bf16.msra.mxu0 %v502
    %518 = vmatpush.bf16.msra.mxu0 %v501
    %519 = vmatpush.bf16.msra.mxu0 %v500
    %520 = vmatpush.bf16.msra.mxu0 %v499
    %521 = vmatpush.bf16.msra.mxu0 %v498
    %522 = vmatmul.bf16.gmra.mxu0 %v446
    %v523 = vpop.f32.mrf.mxu0
    %v524 = vadd.f32 %v465, %v523
    %v525 = vpop.f32.mrf.mxu0
    %526 = vdwg.mxu0
    %527 = vadd.xlane.f32.xlu0 %v524
    %v528 = vpop.xlane.xlu0 %527
    %v529 = vrcp.pop 32.0
    %v530 = vmul.f32 32.0, %v529
    %v531 = vsub.f32 1.0, %v530
    %v532 = vmul.f32 %v529, %v531
    %v533 = vadd.f32 %v529, %v532
    %vm534 = vweird.f32 %v529
    %v535 = vsel %vm534, %v529, %v533
    %v536 = vmul.f32 %v528, %v535
    %v537 = vmul.f32 %v524, %v524
    %538 = vadd.xlane.f32.xlu0 %v537
    %v539 = vpop.xlane.xlu0 %538
    %v540 = vmul.f32 %v539, %v535
    %v541 = vmul.f32 %v536, %v536
    %v542 = vsub.f32 %v540, %v541
    %v543 = vsub.f32 %v524, %v536
    %v544 = vadd.f32 %v542, 1e-05
    %v545 = vrsqrt.pop %v544
    %v546 = vmul.f32 %v545, %v544
    %v547 = vmul.f32 %v546, %v545
    %v548 = vmul.f32 0.5, %v547
    %v549 = vsub.f32 1.5, %v548
    %v550 = vmul.f32 %v545, %v549
    %vm551 = vweird.f32 %v544
    %vm552 = vweird.f32 %v545
    %vm553 = vmor %vm551, %vm552
    %v554 = vsel %vm553, %v545, %v550
    %v555 = vmul.f32 %v543, %v554
    %v556 = vpack.c.bf16 %v555, %v555
    %s557 = scalar_lea.vmem [#allocation2], 384
    %v558 = vld [vmem:[%s557] sm:$0xf]
    %v559 = vld [vmem:[%s557 + $0x4] sm:$0xf]
    %v560 = vld [vmem:[%s557 + $0x8] sm:$0xf]
    %v561 = vld [vmem:[%s557 + $0xc] sm:$0xf]
    %v562 = vld [vmem:[%s557 + $0x10] sm:$0xf]
    %v563 = vld [vmem:[%s557 + $0x14] sm:$0xf]
    %v564 = vld [vmem:[%s557 + $0x18] sm:$0xf]
    %v565 = vld [vmem:[%s557 + $0x1c] sm:$0xf]
    %v566 = vld [vmem:[%s557 + $0x20] sm:$0xf]
    %v567 = vld [vmem:[%s557 + $0x24] sm:$0xf]
    %v568 = vld [vmem:[%s557 + $0x28] sm:$0xf]
    %v569 = vld [vmem:[%s557 + $0x2c] sm:$0xf]
    %v570 = vld [vmem:[%s557 + $0x30] sm:$0xf]
    %v571 = vld [vmem:[%s557 + $0x34] sm:$0xf]
    %v572 = vld [vmem:[%s557 + $0x38] sm:$0xf]
    %v573 = vld [vmem:[%s557 + $0x3c] sm:$0xf]
    %v574 = vld [vmem:[%s2 + $0x6] sm:$0x1]
    %v575 = vperm.slane %v574, 0
    %v592 = vunpack.c.l.b16 %v558
    %v593 = vunpack.c.l.b16 %v559
    %v594 = vunpack.c.l.b16 %v560
    %v595 = vunpack.c.l.b16 %v561
    %v596 = vunpack.c.l.b16 %v562
    %v597 = vunpack.c.l.b16 %v563
    %v598 = vunpack.c.l.b16 %v564
    %v599 = vunpack.c.l.b16 %v565
    %v600 = vunpack.c.l.b16 %v566
    %v601 = vunpack.c.l.b16 %v567
    %v602 = vunpack.c.l.b16 %v568
    %v603 = vunpack.c.l.b16 %v569
    %v604 = vunpack.c.l.b16 %v570
    %v605 = vunpack.c.l.b16 %v571
    %v606 = vunpack.c.l.b16 %v572
    %v607 = vunpack.c.l.b16 %v573
    %v608 = vpack.c.b16 %v593, %v592
    %v609 = vpack.c.b16 %v595, %v594
    %v610 = vpack.c.b16 %v597, %v596
    %v611 = vpack.c.b16 %v599, %v598
    %v612 = vpack.c.b16 %v601, %v600
    %v613 = vpack.c.b16 %v603, %v602
    %v614 = vpack.c.b16 %v605, %v604
    %v615 = vpack.c.b16 %v607, %v606
    %624 = vmatpush.bf16.msra.mxu0 %v615
    %625 = vmatpush.bf16.msra.mxu0 %v614
    %626 = vmatpush.bf16.msra.mxu0 %v613
    %627 = vmatpush.bf16.msra.mxu0 %v612
    %628 = vmatpush.bf16.msra.mxu0 %v611
    %629 = vmatpush.bf16.msra.mxu0 %v610
    %630 = vmatpush.bf16.msra.mxu0 %v609
    %631 = vmatpush.bf16.msra.mxu0 %v608
    %632 = vmatmul.bf16.gmra.mxu0 %v556
    %v633 = vpop.f32.mrf.mxu0
    %v634 = vadd.f32 %v575, %v633
    %v635 = vpop.f32.mrf.mxu0
    %636 = vdwg.mxu0
    %v637 = vmax.f32 %v634, 0.0
    %638 = vadd.xlane.f32.xlu0 %v637
    %v639 = vpop.xlane.xlu0 %638
    %v640 = vmul.f32 %v639, %v535
    %v641 = vmul.f32 %v637, %v637
    %642 = vadd.xlane.f32.xlu0 %v641
    %v643 = vpop.xlane.xlu0 %642
    %v644 = vmul.f32 %v643, %v535
    %v645 = vmul.f32 %v640, %v640
    %v646 = vsub.f32 %v644, %v645
    %v647 = vsub.f32 %v637, %v640
    %v648 = vadd.f32 %v646, 1e-05
    %v649 = vrsqrt.pop %v648
    %v650 = vmul.f32 %v649, %v648
    %v651 = vmul.f32 %v650, %v649
    %v652 = vmul.f32 0.5, %v651
    %v653 = vsub.f32 1.5, %v652
    %v654 = vmul.f32 %v649, %v653
    %vm655 = vweird.f32 %v648
    %vm656 = vweird.f32 %v649
    %vm657 = vmor %vm655, %vm656
    %v658 = vsel %vm657, %v649, %v654
    %v659 = vmul.f32 %v647, %v658
    %v660 = vpack.c.bf16 %v659, %v659
    %s661 = scalar_lea.vmem [#allocation2], 448
    %v662 = vld [vmem:[%s661] sm:$0xf]
    %v663 = vld [vmem:[%s661 + $0x4] sm:$0xf]
    %v664 = vld [vmem:[%s661 + $0x8] sm:$0xf]
    %v665 = vld [vmem:[%s661 + $0xc] sm:$0xf]
    %v666 = vld [vmem:[%s661 + $0x10] sm:$0xf]
    %v667 = vld [vmem:[%s661 + $0x14] sm:$0xf]
    %v668 = vld [vmem:[%s661 + $0x18] sm:$0xf]
    %v669 = vld [vmem:[%s661 + $0x1c] sm:$0xf]
    %v670 = vld [vmem:[%s661 + $0x20] sm:$0xf]
    %v671 = vld [vmem:[%s661 + $0x24] sm:$0xf]
    %v672 = vld [vmem:[%s661 + $0x28] sm:$0xf]
    %v673 = vld [vmem:[%s661 + $0x2c] sm:$0xf]
    %v674 = vld [vmem:[%s661 + $0x30] sm:$0xf]
    %v675 = vld [vmem:[%s661 + $0x34] sm:$0xf]
    %v676 = vld [vmem:[%s661 + $0x38] sm:$0xf]
    %v677 = vld [vmem:[%s661 + $0x3c] sm:$0xf]
    %v678 = vld [vmem:[%s2 + $0x7] sm:$0x1]
    %v679 = vperm.slane %v678, 0
    %v696 = vunpack.c.l.b16 %v662
    %v697 = vunpack.c.l.b16 %v663
    %v698 = vunpack.c.l.b16 %v664
    %v699 = vunpack.c.l.b16 %v665
    %v700 = vunpack.c.l.b16 %v666
    %v701 = vunpack.c.l.b16 %v667
    %v702 = vunpack.c.l.b16 %v668
    %v703 = vunpack.c.l.b16 %v669
    %v704 = vunpack.c.l.b16 %v670
    %v705 = vunpack.c.l.b16 %v671
    %v706 = vunpack.c.l.b16 %v672
    %v707 = vunpack.c.l.b16 %v673
    %v708 = vunpack.c.l.b16 %v674
    %v709 = vunpack.c.l.b16 %v675
    %v710 = vunpack.c.l.b16 %v676
    %v711 = vunpack.c.l.b16 %v677
    %v712 = vpack.c.b16 %v697, %v696
    %v713 = vpack.c.b16 %v699, %v698
    %v714 = vpack.c.b16 %v701, %v700
    %v715 = vpack.c.b16 %v703, %v702
    %v716 = vpack.c.b16 %v705, %v704
    %v717 = vpack.c.b16 %v707, %v706
    %v718 = vpack.c.b16 %v709, %v708
    %v719 = vpack.c.b16 %v711, %v710
    %728 = vmatpush.bf16.msra.mxu0 %v719
    %729 = vmatpush.bf16.msra.mxu0 %v718
    %730 = vmatpush.bf16.msra.mxu0 %v717
    %731 = vmatpush.bf16.msra.mxu0 %v716
    %732 = vmatpush.bf16.msra.mxu0 %v715
    %733 = vmatpush.bf16.msra.mxu0 %v714
    %734 = vmatpush.bf16.msra.mxu0 %v713
    %735 = vmatpush.bf16.msra.mxu0 %v712
    %736 = vmatmul.bf16.gmra.mxu0 %v660
    %v737 = vpop.f32.mrf.mxu0
    %v738 = vadd.f32 %v679, %v737
    %v739 = vpop.f32.mrf.mxu0
    %740 = vdwg.mxu0
    %v741 = vmax.f32 %v738, 0.0
    %v742 = vld [vmem:[%s3] sm:$0xff]
    %v743 = vpack.c.bf16 %v741, %v741
    %s744 = scalar_lea.vmem [#allocation2], 512
    %v745 = vld [vmem:[%s744] sm:$0xf]
    %v746 = vld [vmem:[%s744 + $0x4] sm:$0xf]
    %v747 = vld [vmem:[%s744 + $0x8] sm:$0xf]
    %v748 = vld [vmem:[%s744 + $0xc] sm:$0xf]
    %v749 = vld [vmem:[%s744 + $0x10] sm:$0xf]
    %v750 = vld [vmem:[%s744 + $0x14] sm:$0xf]
    %v751 = vld [vmem:[%s744 + $0x18] sm:$0xf]
    %v752 = vld [vmem:[%s744 + $0x1c] sm:$0xf]
    %v753 = vld [vmem:[%s744 + $0x20] sm:$0xf]
    %v754 = vld [vmem:[%s744 + $0x24] sm:$0xf]
    %v755 = vld [vmem:[%s744 + $0x28] sm:$0xf]
    %v756 = vld [vmem:[%s744 + $0x2c] sm:$0xf]
    %v757 = vld [vmem:[%s744 + $0x30] sm:$0xf]
    %v758 = vld [vmem:[%s744 + $0x34] sm:$0xf]
    %v759 = vld [vmem:[%s744 + $0x38] sm:$0xf]
    %v760 = vld [vmem:[%s744 + $0x3c] sm:$0xf]
    %v761 = vld [vmem:[%s2 + $0x8] sm:$0x1]
    %v762 = vperm.slane %v761, 0
    %v779 = vunpack.c.l.b16 %v745
    %v780 = vunpack.c.l.b16 %v746
    %v781 = vunpack.c.l.b16 %v747
    %v782 = vunpack.c.l.b16 %v748
    %v783 = vunpack.c.l.b16 %v749
    %v784 = vunpack.c.l.b16 %v750
    %v785 = vunpack.c.l.b16 %v751
    %v786 = vunpack.c.l.b16 %v752
    %v787 = vunpack.c.l.b16 %v753
    %v788 = vunpack.c.l.b16 %v754
    %v789 = vunpack.c.l.b16 %v755
    %v790 = vunpack.c.l.b16 %v756
    %v791 = vunpack.c.l.b16 %v757
    %v792 = vunpack.c.l.b16 %v758
    %v793 = vunpack.c.l.b16 %v759
    %v794 = vunpack.c.l.b16 %v760
    %v795 = vpack.c.b16 %v780, %v779
    %v796 = vpack.c.b16 %v782, %v781
    %v797 = vpack.c.b16 %v784, %v783
    %v798 = vpack.c.b16 %v786, %v785
    %v799 = vpack.c.b16 %v788, %v787
    %v800 = vpack.c.b16 %v790, %v789
    %v801 = vpack.c.b16 %v792, %v791
    %v802 = vpack.c.b16 %v794, %v793
    %811 = vmatpush.bf16.msra.mxu0 %v802
    %812 = vmatpush.bf16.msra.mxu0 %v801
    %813 = vmatpush.bf16.msra.mxu0 %v800
    %814 = vmatpush.bf16.msra.mxu0 %v799
    %815 = vmatpush.bf16.msra.mxu0 %v798
    %816 = vmatpush.bf16.msra.mxu0 %v797
    %817 = vmatpush.bf16.msra.mxu0 %v796
    %818 = vmatpush.bf16.msra.mxu0 %v795
    %819 = vmatmul.bf16.gmra.mxu0 %v743
    %v820 = vpop.f32.mrf.mxu0
    %v821 = vadd.f32 %v762, %v820
    %v822 = vpop.f32.mrf.mxu0
    %823 = vdwg.mxu0
    %v824 = vadd.f32 %v742, %v821
    %825 = vst [vmem:[%s3] sm:$0xff] %v824
    // Predicated region
    $region18: #{fwd.1} parent=1 // pred_check
      _
    $region19: #{fwd.1} parent=1 // pred_check_branch
      %827 = sbr.rel (0) target = $region21
    $region20: #{fwd.1} parent=1 // pred_region
      _
    $region21: #{fwd.1} parent=1 // pred_fallthru
      _
    // Predicated region
    $region22: #{fwd.1} parent=1 // pred_check
      _
    $region23: #{fwd.1} parent=1 // pred_check_branch
      %829 = sbr.rel (0) target = $region25
    $region24: #{fwd.1} parent=1 // pred_region
      _
    $region25: #{fwd.1} parent=1 // pred_fallthru
      _
    %830 = vsyncpa [#allocation3], 1

</llo_original>
